<compile_context>
chip_gen: v7x
topology: tpu7x:2x2x1
jax: 0.10.0
libtpu: 0.0.40
codegen_flags: <defaults>
</compile_context>

<pallas_src>
import functools
from typing import Tuple

import jax
import jax.numpy as jnp
from jax.experimental import pallas as pl
from jax.experimental.pallas import tpu as pltpu


def pair(t: int) -> Tuple[int, int]:
    return (t, t)


def _round_up(x: int, m: int) -> int:
    return ((x + m - 1) // m) * m


# ---------------------------------------------------------------------------
# Pallas kernel: out_tile = x_tile @ W + b
#   x_ref: (TM, K)   w_ref: (K, E_pad)   b_ref: (1, E_pad)   o_ref: (TM, E_pad)
# ---------------------------------------------------------------------------
def _linear_kernel(x_ref, w_ref, b_ref, o_ref):
    acc = jnp.dot(x_ref[...], w_ref[...], preferred_element_type=jnp.float32)
    o_ref[...] = (acc + b_ref[...]).astype(o_ref.dtype)


def _pallas_linear(x2d: jax.Array, w_pad: jax.Array, bias_pad: jax.Array,
                   *, out_features: int, tm: int = 512) -> jax.Array:
    """x2d: (M, K), w_pad: (K, E_pad), bias_pad: (1, E_pad) -> (M, out_features)."""
    M, K = x2d.shape
    Kw, E_pad = w_pad.shape
    assert Kw == K

    # Tile size over M: big (amortizes ~0.35us/grid-step) but clamped for tiny inputs.
    TM = min(tm, _round_up(M, 8))
    M_pad = _round_up(M, TM)

    if M_pad != M:
        # Zero-pad rows only; padded M rows are sliced off below.
        x2d = jnp.pad(x2d, ((0, M_pad - M), (0, 0)))

    grid = (M_pad // TM,)
    flops = 2 * M_pad * K * E_pad
    bytes_accessed = 4 * (M_pad * K + K * E_pad + M_pad * E_pad + E_pad)

    out_pad = pl.pallas_call(
        _linear_kernel,
        out_shape=jax.ShapeDtypeStruct((M_pad, E_pad), x2d.dtype),
        grid_spec=pl.GridSpec(
            grid=grid,
            in_specs=[
                pl.BlockSpec((TM, K), lambda i: (i, 0)),        # x: streamed over M
                pl.BlockSpec((K, E_pad), lambda i: (0, 0)),     # W: resident
                pl.BlockSpec((1, E_pad), lambda i: (0, 0)),     # bias: resident
            ],
            out_specs=pl.BlockSpec((TM, E_pad), lambda i: (i, 0)),
        ),
        compiler_params=pltpu.CompilerParams(
            dimension_semantics=("parallel",),   # shard M across TCs on v7x megacore
        ),
        cost_estimate=pl.CostEstimate(
            flops=flops, transcendentals=0, bytes_accessed=bytes_accessed),
    )(x2d, w_pad, bias_pad)

    return out_pad[:M, :out_features]


# ---------------------------------------------------------------------------
# Jitted forward: rearrange (layout glue) + Pallas linear, fused in one program.
# ---------------------------------------------------------------------------
@functools.partial(jax.jit, static_argnames=("p1", "p2", "embed_depth"))
def _forward(image_batch, w_pad, bias_pad, *, p1, p2, embed_depth):
    B, C, H, W = image_batch.shape
    h, w = H // p1, W // p2

    # Rearrange 'b c (h p1) (w p2) -> b (h w) (p1 p2 c)'
    x = image_batch.reshape(B, C, h, p1, w, p2)
    x = jnp.transpose(x, (0, 2, 4, 3, 5, 1))          # b h w p1 p2 c
    M = B * h * w
    K = p1 * p2 * C
    x2d = x.reshape(M, K)

    out2d = _pallas_linear(x2d, w_pad, bias_pad, out_features=embed_depth)
    return out2d.reshape(B, h * w, embed_depth)


# ---------------------------------------------------------------------------
# Module equivalent
# ---------------------------------------------------------------------------
class PatchEmbeddingSimple:
    def __init__(self, *, image_size: int, patch_size: int, embed_depth: int,
                 pool: str, channels: int, key: jax.Array):
        self.name = "PatchEmbedding"
        image_height, image_width = pair(image_size)
        patch_height, patch_width = pair(patch_size)
        assert image_height % patch_height == 0 and image_width % patch_width == 0
        self.patch_height = patch_height
        self.patch_width = patch_width
        self.channels = channels
        self.patch_dim = channels * patch_height * patch_width
        self.embed_depth = embed_depth

        # Deterministic init mimicking nn.Linear: U(-1/sqrt(fan_in), 1/sqrt(fan_in))
        kw, kb = jax.random.split(key)
        bound = 1.0 / (self.patch_dim ** 0.5)
        # PyTorch weight shape: (embed_depth, patch_dim); store transposed for the GEMM.
        w_torch = jax.random.uniform(
            kw, (embed_depth, self.patch_dim), jnp.float32, -bound, bound)
        self.w_kx_e = jnp.asarray(w_torch.T)                       # (patch_dim, embed_depth)
        self.bias = jax.random.uniform(
            kb, (embed_depth,), jnp.float32, -bound, bound)        # (embed_depth,)

        # Lane-aligned (multiple-of-128) padded weight/bias along E, built once at init.
        E_pad = _round_up(embed_depth, 128)
        self.w_pad = (jnp.zeros((self.patch_dim, E_pad), jnp.float32)
                      .at[:, :embed_depth].set(self.w_kx_e))
        self.bias_pad = (jnp.zeros((1, E_pad), jnp.float32)
                         .at[0, :embed_depth].set(self.bias))

    def __call__(self, image_batch: jax.Array) -> jax.Array:
        # image_batch: (B, C, H, W)  -- NCHW, matching PyTorch.
        return _forward(image_batch, self.w_pad, self.bias_pad,
                        p1=self.patch_height, p2=self.patch_width,
                        embed_depth=self.embed_depth)


# ---------------------------------------------------------------------------
# Main
# ---------------------------------------------------------------------------
if __name__ == "__main__":
    key = jax.random.PRNGKey(0)
    k_img, k_params = jax.random.split(key)

    B, C, IMG, PATCH, EMBED = 2, 4, 16, 4, 32
    x = jax.random.normal(k_img, (B, C, IMG, IMG), jnp.float32)

    module = PatchEmbeddingSimple(
        image_size=IMG, patch_size=PATCH, embed_depth=EMBED,
        pool="cls", channels=C, key=k_params)

    out = module(x)
    out = jax.block_until_ready(out)

    # Pure-JAX reference check (same rearrange + matmul, unpadded weights).
    h = w = IMG // PATCH
    xr = x.reshape(B, C, h, PATCH, w, PATCH)
    xr = jnp.transpose(xr, (0, 2, 4, 3, 5, 1)).reshape(B, h * w, C * PATCH * PATCH)
    ref = xr @ module.w_kx_e + module.bias
    assert out.shape == (B, h * w, EMBED)
    assert jnp.allclose(out, ref, atol=1e-5, rtol=1e-5)

    print("KERNEL_OK")
</pallas_src>

<mosaic_0001>
module attributes {stable_mosaic.version = 11 : i64} {
  func.func @_linear_kernel(%arg0: i32, %arg1: memref<32x64xf32, #tpu.memory_space<vmem>>, %arg2: memref<64x128xf32, #tpu.memory_space<vmem>>, %arg3: memref<1x128xf32, #tpu.memory_space<vmem>>, %arg4: memref<32x128xf32, #tpu.memory_space<vmem>>) attributes {dimension_semantics = [#tpu.dimension_semantics<parallel>], iteration_bounds = array<i64: 1>, scalar_prefetch = 0 : i64, scratch_operands = 0 : i64, tpu.core_type = #tpu.core_type<tc>, window_params = [{transform_indices = @transform_0, window_bounds = array<i64: 32, 64>}, {pipeline_mode = #tpu.pipeline_mode<synchronous>, transform_indices = @transform_1, window_bounds = array<i64: 64, 128>}, {pipeline_mode = #tpu.pipeline_mode<synchronous>, transform_indices = @transform_2, window_bounds = array<i64: 1, 128>}, {transform_indices = @transform_3, window_bounds = array<i64: 32, 128>}]} {
    %c0 = arith.constant 0 : index
    %c0_0 = arith.constant 0 : index
    %0 = vector.load %arg1[%c0, %c0_0] : memref<32x64xf32, #tpu.memory_space<vmem>>, vector<32x64xf32>
    %c0_1 = arith.constant 0 : index
    %c0_2 = arith.constant 0 : index
    %1 = vector.load %arg2[%c0_1, %c0_2] : memref<64x128xf32, #tpu.memory_space<vmem>>, vector<64x128xf32>
    %cst = arith.constant dense<0.000000e+00> : vector<32x128xf32>
    %2 = tpu.matmul %0, %1, %cst {dimension_numbers = #tpu.dot_dimension_numbers<[1], [0], [0], [1], [0, 0, 1, 1], [], []>} : vector<32x64xf32>, vector<64x128xf32>, vector<32x128xf32> -> vector<32x128xf32>
    %c0_3 = arith.constant 0 : index
    %c0_4 = arith.constant 0 : index
    %3 = vector.load %arg3[%c0_3, %c0_4] : memref<1x128xf32, #tpu.memory_space<vmem>>, vector<1x128xf32>
    %4 = vector.broadcast %3 : vector<1x128xf32> to vector<32x128xf32>
    %5 = arith.addf %2, %4 : vector<32x128xf32>
    %c0_5 = arith.constant 0 : index
    %c0_6 = arith.constant 0 : index
    %6 = vector.load %arg4[%c0_5, %c0_6] : memref<32x128xf32, #tpu.memory_space<vmem>>, vector<32x128xf32>
    tpu.vector_store %arg4[%c0_5, %c0_6], %5 {strides = array<i32>} : memref<32x128xf32, #tpu.memory_space<vmem>>, vector<32x128xf32>,
    return
  }
  func.func @transform_0(%arg0: i32) -> (i32, i32) {
    %c0_i32 = arith.constant 0 : i32
    %c0_i32_0 = arith.constant 0 : i32
    return %arg0, %c0_i32 : i32, i32
  }
  func.func @transform_1(%arg0: i32) -> (i32, i32) {
    %c0_i32 = arith.constant 0 : i32
    %c0_i32_0 = arith.constant 0 : i32
    %c0_i32_1 = arith.constant 0 : i32
    return %c0_i32, %c0_i32_0 : i32, i32
  }
  func.func @transform_2(%arg0: i32) -> (i32, i32) {
    %c0_i32 = arith.constant 0 : i32
    %c0_i32_0 = arith.constant 0 : i32
    %c0_i32_1 = arith.constant 0 : i32
    return %c0_i32, %c0_i32_0 : i32, i32
  }
  func.func @transform_3(%arg0: i32) -> (i32, i32) {
    %c0_i32 = arith.constant 0 : i32
    %c0_i32_0 = arith.constant 0 : i32
    return %arg0, %c0_i32 : i32, i32
  }
}

</mosaic_0001>

<llo_original>
// kernel: _forward.1
$region0: #{_forward.1}
  #allocation0 [shape = 'u32[]', space=smem, size = 0x4, offset = 0x4, fixed_abs, tag = 'smem constant byte address 0x4 - core index']
  #allocation1 [shape = 'u32[144,128]{1,0:T(1,128)}', space=vmem, size = 0x12000, scoped, tag = 'internal scratch']
  %s0 = inlined_call_operand.vmem [shape: f32[32,64], index: 0, kind: input, shape index: {}]
  %s1 = inlined_call_operand.vmem [shape: f32[64,128], index: 1, kind: input, shape index: {}]
  %s2 = inlined_call_operand.vmem [shape: f32[1,128], index: 2, kind: input, shape index: {}]
  %s3 = inlined_call_operand.hbm [shape: f32[32,128], index: 3, kind: output, shape index: {}]
  %s4 = sld [smem:[#allocation0]]
  $region22: #{_forward.1} parent=0
    _
  %s6 = ssub.s32 1, %s4
  %s7 = scalar_select 0, %s6, %s4
  $region1: #{_forward.1} parent=0
    #allocation2 [shape = 'u8[16384]{0}', space=vmem, size = 0x4000, scoped, tag = 'output window, operand 0, single buffered']
    #allocation3 [shape = 's32[1]{0}', space=sflag, size = 0x4, scoped, tag = 'scoped memory for _forward.1']
    %8 = vsyncpa [#allocation3], 0
    // Predicated region
    $region2: #{_forward.1} parent=1 // pred_check
      _
    $region3: #{_forward.1} parent=1 // pred_check_branch
      %10 = sbr.rel (0) target = $region5
    $region4: #{_forward.1} parent=1 // pred_region
      _
    $region5: #{_forward.1} parent=1 // pred_fallthru
      _
    // Predicated region
    $region6: #{_forward.1} parent=1 // pred_check
      _
    $region7: #{_forward.1} parent=1 // pred_check_branch
      %12 = sbr.rel (0) target = $region9
    $region8: #{_forward.1} parent=1 // pred_region
      _
    $region9: #{_forward.1} parent=1 // pred_fallthru
      _
    // Predicated region
    $region10: #{_forward.1} parent=1 // pred_check
      _
    $region11: #{_forward.1} parent=1 // pred_check_branch
      %14 = sbr.rel (0) target = $region13
    $region12: #{_forward.1} parent=1 // pred_region
      _
    $region13: #{_forward.1} parent=1 // pred_fallthru
      _
    %v15 = vld [vmem:[%s0] sm:$0xff]
    %v16 = vld [vmem:[%s0 + $0x8] sm:$0xff]
    %v17 = vld [vmem:[%s0 + $0x10] sm:$0xff]
    %v18 = vld [vmem:[%s0 + $0x18] sm:$0xff]
    %v19 = vld [vmem:[%s1] sm:$0xff]
    %v20 = vld [vmem:[%s1 + $0x8] sm:$0xff]
    %v21 = vld [vmem:[%s1 + $0x10] sm:$0xff]
    %v22 = vld [vmem:[%s1 + $0x18] sm:$0xff]
    %v23 = vld [vmem:[%s1 + $0x20] sm:$0xff]
    %v24 = vld [vmem:[%s1 + $0x28] sm:$0xff]
    %v25 = vld [vmem:[%s1 + $0x30] sm:$0xff]
    %v26 = vld [vmem:[%s1 + $0x38] sm:$0xff]
    %v27 = vld [vmem:[%s2] sm:$0x1]
    %v29 = vlaneseq
    %v30 = vshrl.u32 %v29, 7
    %v31 = vsub.s32 0, %v30
    %v32 = vrot.slane %v27, %v31
    %vm34 = vcmask 523264
    %v36 = vsel %vm34, %v15, 0
    %v39 = vsel %vm34, %v16, 0
    %v42 = vsel %vm34, %v17, 0
    %v45 = vsel %vm34, %v18, 0
    %47 = vmatprep.subr.mxu0 0.0
    %48 = vmatpush1.msra.mxu0 %v19
    %49 = vmatprep.subr.mxu0 0.0
    %50 = vmatpush1.msra.mxu0 %v20
    %51 = vmatprep.subr.mxu0 0.0
    %52 = vmatpush1.msra.mxu0 %v21
    %53 = vmatprep.subr.mxu0 0.0
    %54 = vmatpush1.msra.mxu0 %v22
    %55 = vmatprep.subr.mxu0 0.0
    %56 = vmatpush1.msra.mxu0 %v23
    %57 = vmatprep.subr.mxu0 0.0
    %58 = vmatpush1.msra.mxu0 %v24
    %59 = vmatprep.subr.mxu0 0.0
    %60 = vmatpush1.msra.mxu0 %v25
    %61 = vmatprep.subr.mxu0 0.0
    %62 = vmatpush1.msra.mxu0 %v26
    %63 = vmatprep.subr.mxu0 0.0
    %64 = vmatpush1.msra.mxu0 0.0
    %65 = vmatprep.subr.mxu0 0.0
    %66 = vmatpush1.msra.mxu0 0.0
    %67 = vmatprep.subr.mxu0 0.0
    %68 = vmatpush1.msra.mxu0 0.0
    %69 = vmatprep.subr.mxu0 0.0
    %70 = vmatpush1.msra.mxu0 0.0
    %71 = vmatprep.subr.mxu0 0.0
    %72 = vmatpush1.msra.mxu0 0.0
    %73 = vmatprep.subr.mxu0 0.0
    %74 = vmatpush1.msra.mxu0 0.0
    %75 = vmatprep.subr.mxu0 0.0
    %76 = vmatpush1.msra.mxu0 0.0
    %77 = vmatprep.subr.mxu0 0.0
    %78 = vmatpush1.msra.mxu0 0.0
    %79 = vmatprep.subr.mxu0 0.0
    %80 = vmatpush1.msra.mxu0 0.0
    %81 = vmatprep.subr.mxu0 0.0
    %82 = vmatpush1.msra.mxu0 0.0
    %83 = vmatprep.subr.mxu0 0.0
    %84 = vmatpush1.msra.mxu0 0.0
    %85 = vmatprep.subr.mxu0 0.0
    %86 = vmatpush1.msra.mxu0 0.0
    %87 = vmatprep.subr.mxu0 0.0
    %88 = vmatpush1.msra.mxu0 0.0
    %89 = vmatprep.subr.mxu0 0.0
    %90 = vmatpush1.msra.mxu0 0.0
    %91 = vmatprep.subr.mxu0 0.0
    %92 = vmatpush1.msra.mxu0 0.0
    %93 = vmatprep.subr.mxu0 0.0
    %94 = vmatpush1.msra.mxu0 0.0
    %95 = vmatprep.subr.mxu0 0.0
    %96 = vmatpush1.msra.mxu0 0.0
    %97 = vmatprep.subr.mxu0 0.0
    %98 = vmatpush1.msra.mxu0 0.0
    %99 = vmatprep.subr.mxu0 0.0
    %100 = vmatpush1.msra.mxu0 0.0
    %101 = vmatprep.subr.mxu0 0.0
    %102 = vmatpush1.msra.mxu0 0.0
    %103 = vmatprep.subr.mxu0 0.0
    %104 = vmatpush1.msra.mxu0 0.0
    %105 = vmatprep.subr.mxu0 0.0
    %106 = vmatpush1.msra.mxu0 0.0
    %107 = vmatprep.subr.mxu0 0.0
    %108 = vmatpush1.msra.mxu0 0.0
    %109 = vmatprep.subr.mxu0 0.0
    %110 = vmatpush1.msra.mxu0 0.0
    %111 = vmatprep.mubr.f32.mxu0 0.0
    %112 = vmatmul.mubr.f32.gmra.mrb[0].mxu0 %v36
    %v113 = vpop.f32.mrb[0].mxu0
    %v114 = vadd.f32 %v32, %v113
    %v115 = vpop.f32.mrb[0].mxu0
    %116 = vmatprep.mubr.f32.mxu0 0.0
    %117 = vmatmul.mubr.f32.gmra.mrb[0].mxu0 %v39
    %v118 = vpop.f32.mrb[0].mxu0
    %v119 = vadd.f32 %v32, %v118
    %v120 = vpop.f32.mrb[0].mxu0
    %121 = vmatprep.mubr.f32.mxu0 0.0
    %122 = vmatmul.mubr.f32.gmra.mrb[0].mxu0 %v42
    %v123 = vpop.f32.mrb[0].mxu0
    %v124 = vadd.f32 %v32, %v123
    %v125 = vpop.f32.mrb[0].mxu0
    %126 = vmatprep.mubr.f32.mxu0 0.0
    %127 = vmatmul.mubr.f32.gmra.mrb[0].mxu0 %v45
    %v128 = vpop.f32.mrb[0].mxu0
    %v129 = vadd.f32 %v32, %v128
    %v130 = vpop.f32.mrb[0].mxu0
    %131 = vdwg.mxu0
    %132 = vst [vmem:[#allocation2] sm:$0xff] %v114
    %133 = vst [vmem:[#allocation2 + $0x8] sm:$0xff] %v119
    %134 = vst [vmem:[#allocation2 + $0x10] sm:$0xff] %v124
    %135 = vst [vmem:[#allocation2 + $0x18] sm:$0xff] %v129
    // Predicated region
    $region14: #{_forward.1} parent=1 // pred_check
      _
    $region15: #{_forward.1} parent=1 // pred_check_branch
      %137 = sbr.rel (0) target = $region17
    $region16: #{_forward.1} parent=1 // pred_region
      %s139 = ssub.s32 512, 512
      %140 = vsyncadd [#allocation3], %s139
      %s141 = sshll.u32 [#allocation2], 4
      %s142 = int_to_ptr.vmem [resolvable:$true] %s141
      %147 = dma.vmem_to_hbm [thread:$0]  %s142, 512, %s3, [#allocation3], 128, 128, 8
    $region17: #{_forward.1} parent=1 // pred_fallthru
      _
    // Predicated region
    $region18: #{_forward.1} parent=1 // pred_check
      _
    $region19: #{_forward.1} parent=1 // pred_check_branch
      %149 = sbr.rel (0) target = $region21
    $region20: #{_forward.1} parent=1 // pred_region
      %150 = dma.done [#allocation3], 512
    $region21: #{_forward.1} parent=1 // pred_fallthru
      _
    %151 = vsyncpa [#allocation3], 1

</llo_original>
